<compile_context>
chip_gen: v6e
topology: v6e:2x2x1
jax: 0.10.0
libtpu: 0.0.40
codegen_flags: <defaults>
</compile_context>

<pallas_src>
import math
import functools

import jax
import jax.numpy as jnp
from jax.experimental import pallas as pl
from jax.experimental.pallas import tpu as pltpu

_LANE = 128


# ----------------------------- buffer setup (glue) ---------------------------
def make_positional_encoding(d_model: int, seq_len: int) -> jnp.ndarray:
    """Reproduces the PyTorch __init__ buffer: shape (seq_len + 1, d_model)."""
    length = seq_len + 1
    position = jnp.arange(length, dtype=jnp.float32)[:, None]                  # (L, 1)
    div_term = jnp.exp(
        jnp.arange(0, d_model, 2, dtype=jnp.float32) * (-math.log(10000.0) / d_model)
    )                                                                           # (D/2,)
    pe = jnp.zeros((length, d_model), dtype=jnp.float32)
    pe = pe.at[:, 0::2].set(jnp.sin(position * div_term))
    pe = pe.at[:, 1::2].set(jnp.cos(position * div_term))
    return pe                                                                   # (L, D)


# --------------------------------- kernel ------------------------------------
def _pos_enc_kernel(seed_ref, x_ref, pe_ref, o_ref, *, dropout_p, training, row_total):
    bt, rt = x_ref.shape              # static tile shape
    pe_rows = pe_ref.shape[0]

    xf = x_ref[...].astype(jnp.float32)          # add in fp32 (pe buffer is fp32)
    pe = pe_ref[...]                             # (pe_rows, rt) fp32, resident

    if pe_rows == bt:
        y = xf + pe
    else:
        # bt is a multiple of pe_rows (wrapper guarantees): broadcast along the
        # leading, non-vreg axis -> plain full-vreg vadd, no sublane broadcast.
        y = (xf.reshape(bt // pe_rows, pe_rows, rt) + pe[None, :, :]).reshape(bt, rt)

    if training and dropout_p > 0.0:
        # Inverted dropout.  Mask = hash(global element index, seed) using only
        # portable jnp ops (pltpu.prng_* has no interpret-mode lowering).  The
        # mask is tile/grid-layout invariant and costs no extra HBM traffic.
        r0 = pl.program_id(0) * bt
        c0 = pl.program_id(1) * rt
        rows = (jax.lax.broadcasted_iota(jnp.int32, (bt, rt), 0) + r0).astype(jnp.uint32)
        cols = (jax.lax.broadcasted_iota(jnp.int32, (bt, rt), 1) + c0).astype(jnp.uint32)
        idx = rows * jnp.uint32(row_total % (1 << 32)) + cols
        seed_u = seed_ref[0].astype(jnp.uint32)
        h = idx + seed_u * jnp.uint32(0x9E3779B9)
        h = h ^ (h >> 16)
        h = h * jnp.uint32(0x7FEB352D)
        h = h ^ (h >> 15)
        h = h * jnp.uint32(0x846CA68B)
        h = h ^ (h >> 16)
        thresh = jnp.uint32(min(int(dropout_p * float(1 << 32)), (1 << 32) - 1))
        keep = h >= thresh                                    # P(keep) = 1 - p
        scale = jnp.float32(1.0 / (1.0 - dropout_p))
        y = jnp.where(keep, y * scale, jnp.float32(0.0))

    o_ref[...] = y.astype(o_ref.dtype)


# -------------------------------- wrapper ------------------------------------
def positional_encoding_forward(x, pe, *, dropout_p=0.0, training=False, seed=0,
                                target_tile_bytes=4 * 1024 * 1024, donate_x=False):
    """x: (B, S, D); pe: (seq_len+1, D) with S <= seq_len+1."""
    B, S, D = x.shape
    row = S * D
    itemsize = jnp.dtype(x.dtype).itemsize
    pack = max(1, 32 // itemsize)     # rows per native sublane tile (8 f32 / 16 bf16 / 32 i8)

    # ---- tile selection: per-tile bytes never exceed ~target_tile_bytes ----
    row_bytes = row * itemsize
    if row % _LANE == 0 and row_bytes * min(B, pack) > target_tile_bytes:
        # One flattened row (x pack rows) is too big: tile the lane dim too.
        rt = (target_tile_bytes // (itemsize * min(B, pack))) // _LANE * _LANE
        rt = int(min(max(_LANE, rt), row))
    else:
        rt = row
    bt = max(1, target_tile_bytes // (rt * itemsize))
    bt = int(min(bt, B))
    if B >= pack and bt >= pack:
        bt = (bt // pack) * pack      # sublane-packed rows; no floor above the target

    n_b, n_r = pl.cdiv(B, bt), pl.cdiv(row, rt)
    # v7x megacore: guarantee >=2 grid steps when the batch is big enough to split.
    if n_b * n_r == 1 and B >= 2 * pack:
        bt = max(pack, ((B // 2) // pack) * pack)
        n_b = pl.cdiv(B, bt)

    # pe rows: full sublane pack when the x tile is pack-aligned, else match bt.
    pe_rows = pack if (bt % pack == 0) else bt

    # pe: slice once, keep fp32 (matches the torch fp32 buffer; add is fp32),
    # pre-broadcast so the in-kernel add needs no sublane broadcast.
    pe_slab = jnp.broadcast_to(pe[:S, :].astype(jnp.float32).reshape(1, row),
                               (pe_rows, row))
    x2 = x.reshape(B, row)

    tile_bytes = bt * rt * itemsize
    pe_bytes = pe_rows * rt * 4
    vmem_limit = int(min(48 << 20, max(32 << 20, 4 * tile_bytes + 2 * pe_bytes + (4 << 20))))

    kernel = functools.partial(
        _pos_enc_kernel,
        dropout_p=float(dropout_p),
        training=bool(training),
        row_total=row,
    )

    grid_spec = pltpu.PrefetchScalarGridSpec(
        num_scalar_prefetch=1,                       # seed scalar lands in SMEM
        grid=(n_b, n_r),
        in_specs=[
            pl.BlockSpec((bt, rt), lambda i, j, seed_ref: (i, j)),      # x rows
            # TODO(synk): pipeline_mode=pl.Buffered(1) would drop pe's second
            # buffer (its index_map is constant in i); omitted for jax compat.
            pl.BlockSpec((pe_rows, rt), lambda i, j, seed_ref: (0, j)),  # pe (resident per j)
        ],
        out_specs=pl.BlockSpec((bt, rt), lambda i, j, seed_ref: (i, j)),
    )

    call_kwargs = {}
    if donate_x:
        call_kwargs["input_output_aliases"] = {1: 0}   # reuse x2's HBM buffer for the output

    out2 = pl.pallas_call(
        kernel,
        out_shape=jax.ShapeDtypeStruct((B, row), x.dtype),
        grid_spec=grid_spec,
        compiler_params=pltpu.CompilerParams(
            dimension_semantics=("parallel", "parallel"),
            vmem_limit_bytes=vmem_limit,
        ),
        **call_kwargs,
    )(jnp.array([seed], dtype=jnp.int32), x2, pe_slab)

    return out2.reshape(B, S, D)


# --------------------------------- main --------------------------------------
if __name__ == "__main__":
    # Module hyperparams: d_model=32, seq_len=8  -> pe buffer is (9, 32).
    d_model, seq_len, dropout_p = 32, 8, 0.1
    B, S = 2, 8  # forward uses pe[:, :x.shape[1], :], so S <= seq_len + 1

    key = jax.random.PRNGKey(0)
    x = jax.random.normal(key, (B, S, d_model), dtype=jnp.float32)

    pe = make_positional_encoding(d_model, seq_len)
    ref = x + pe[None, :S, :]

    # --- eval-mode forward (dropout is identity) ---
    out = positional_encoding_forward(x, pe, dropout_p=dropout_p, training=False)
    out = jax.block_until_ready(out)
    assert out.shape == x.shape and out.dtype == x.dtype
    assert jnp.allclose(out, ref, atol=1e-6, rtol=1e-6)

    # --- training-mode forward (exercise dropout path) ---
    # RNG stream differs from torch, but semantics must hold: every element is
    # either exactly 0 (dropped) or ref / (1 - p) (kept), with ~p dropped.
    out_tr = positional_encoding_forward(
        x, pe, dropout_p=dropout_p, training=True, seed=1234
    )
    out_tr = jax.block_until_ready(out_tr)
    scale = 1.0 / (1.0 - dropout_p)
    is_zero = out_tr == 0.0
    is_scaled = jnp.isclose(out_tr, ref * scale, atol=1e-5, rtol=1e-5)
    assert bool(jnp.all(is_zero | is_scaled))
    drop_frac = float(jnp.mean(is_zero.astype(jnp.float32)))
    assert 0.0 < drop_frac < 0.5  # expected ~0.1

    print("KERNEL_OK")
</pallas_src>

<mosaic_0001>
module attributes {stable_mosaic.version = 11 : i64} {
  func.func @_pos_enc_kernel(%arg0: i32, %arg1: i32, %arg2: memref<1xi32, #tpu.memory_space<smem>>, %arg3: memref<2x256xf32, #tpu.memory_space<vmem>>, %arg4: memref<2x256xf32, #tpu.memory_space<vmem>>, %arg5: memref<2x256xf32, #tpu.memory_space<vmem>>) attributes {dimension_semantics = [#tpu.dimension_semantics<parallel>, #tpu.dimension_semantics<parallel>], iteration_bounds = array<i64: 1, 1>, scalar_prefetch = 1 : i64, scratch_operands = 0 : i64, tpu.core_type = #tpu.core_type<tc>, window_params = [{transform_indices = @transform_0, window_bounds = array<i64: 2, 256>}, {transform_indices = @transform_1, window_bounds = array<i64: 2, 256>}, {transform_indices = @transform_2, window_bounds = array<i64: 2, 256>}]} {
    %c0 = arith.constant 0 : index
    %c0_0 = arith.constant 0 : index
    %0 = vector.load %arg3[%c0, %c0_0] : memref<2x256xf32, #tpu.memory_space<vmem>>, vector<2x256xf32>
    %c0_1 = arith.constant 0 : index
    %c0_2 = arith.constant 0 : index
    %1 = vector.load %arg4[%c0_1, %c0_2] : memref<2x256xf32, #tpu.memory_space<vmem>>, vector<2x256xf32>
    %2 = arith.addf %0, %1 : vector<2x256xf32>
    %c0_3 = arith.constant 0 : index
    %c0_4 = arith.constant 0 : index
    %3 = vector.load %arg5[%c0_3, %c0_4] : memref<2x256xf32, #tpu.memory_space<vmem>>, vector<2x256xf32>
    tpu.vector_store %arg5[%c0_3, %c0_4], %2 {strides = array<i32>} : memref<2x256xf32, #tpu.memory_space<vmem>>, vector<2x256xf32>,
    return
  }
  func.func @transform_0(%arg0: i32, %arg1: i32, %arg2: memref<1xi32, #tpu.memory_space<smem>>) -> (i32, i32) {
    %c0_i32 = arith.constant 0 : i32
    return %arg0, %arg1 : i32, i32
  }
  func.func @transform_1(%arg0: i32, %arg1: i32, %arg2: memref<1xi32, #tpu.memory_space<smem>>) -> (i32, i32) {
    %c0_i32 = arith.constant 0 : i32
    %c0_i32_0 = arith.constant 0 : i32
    return %c0_i32, %arg1 : i32, i32
  }
  func.func @transform_2(%arg0: i32, %arg1: i32, %arg2: memref<1xi32, #tpu.memory_space<smem>>) -> (i32, i32) {
    %c0_i32 = arith.constant 0 : i32
    return %arg0, %arg1 : i32, i32
  }
}

</mosaic_0001>

<llo_original>
// kernel: tpu_custom_call.1
$region0: #{tpu_custom_call.1}
  #allocation0 [shape = 'u32[]', space=smem, size = 0x4, offset = 0x4, fixed_abs, tag = 'smem constant byte address 0x4 - core index']
  #allocation1 [shape = 'u32[144,128]{1,0:T(1,128)}', space=vmem, size = 0x12000, scoped, tag = 'internal scratch']
  #allocation2 [shape = 's32[1]{0}', space=sflag, size = 0x4, scoped, tag = 'scoped memory for tpu_custom_call.1']
  #allocation3 [shape = 's32[1]{0:T(128)S(6)}', space=smem, size = 0x200, scoped, tag = 'prefetched SMEM operand 0']
  %s0 = inlined_call_operand.<no memory space> [shape: s32[1], index: 0, kind: input, shape index: {}]
  %s1 = inlined_call_operand.hbm [shape: f32[2,256], index: 1, kind: input, shape index: {}]
  %s2 = inlined_call_operand.hbm [shape: f32[2,256], index: 2, kind: input, shape index: {}]
  %s3 = inlined_call_operand.hbm [shape: f32[2,256], index: 3, kind: output, shape index: {}]
  %s4 = sld [smem:[#allocation0]]
  $region26: #{tpu_custom_call.1} parent=0
    _
  %s6 = ssub.s32 1, %s4
  %s7 = scalar_select 0, %s6, %s4
  %8 = sst [smem:[#allocation3]] %s0
  $region1: #{tpu_custom_call.1} parent=0
    #allocation4 [shape = 'u8[2048]{0}', space=vmem, size = 0x800, scoped, tag = 'input window, operand 1, single buffered']
    #allocation5 [shape = 's32[1]{0}', space=sflag, size = 0x4, scoped, tag = 'scoped memory for tpu_custom_call.1']
    #allocation6 [shape = 's32[1]{0}', space=sflag, size = 0x4, scoped, tag = 'scoped memory for tpu_custom_call.1']
    #allocation7 [shape = 'u8[2048]{0}', space=vmem, size = 0x800, scoped, tag = 'input window, operand 2, single buffered']
    #allocation8 [shape = 's32[1]{0}', space=sflag, size = 0x4, scoped, tag = 'scoped memory for tpu_custom_call.1']
    #allocation9 [shape = 'u8[2048]{0}', space=vmem, size = 0x800, scoped, tag = 'output window, operand 0, single buffered']
    %9 = vsyncpa [#allocation5], 0
    %10 = vsyncpa [#allocation8], 0
    %11 = vsyncpa [#allocation6], 0
    // Predicated region
    $region2: #{tpu_custom_call.1} parent=1 // pred_check
      _
    $region3: #{tpu_custom_call.1} parent=1 // pred_check_branch
      %13 = sbr.rel (0) target = $region5
    $region4: #{tpu_custom_call.1} parent=1 // pred_region
      %s15 = ssub.s32 64, 64
      %16 = vsyncadd [#allocation5], %s15
      %s18 = sshll.u32 [#allocation4], 4
      %s19 = int_to_ptr.vmem [resolvable:$true] %s18
      %21 = dma.hbm_to_vmem [thread:$0]  %s1, 64, %s19, [#allocation5]
    $region5: #{tpu_custom_call.1} parent=1 // pred_fallthru
      _
    // Predicated region
    $region6: #{tpu_custom_call.1} parent=1 // pred_check
      _
    $region7: #{tpu_custom_call.1} parent=1 // pred_check_branch
      %23 = sbr.rel (0) target = $region9
    $region8: #{tpu_custom_call.1} parent=1 // pred_region
      %s25 = ssub.s32 64, 64
      %26 = vsyncadd [#allocation8], %s25
      %s28 = sshll.u32 [#allocation7], 4
      %s29 = int_to_ptr.vmem [resolvable:$true] %s28
      %31 = dma.hbm_to_vmem [thread:$0]  %s2, 64, %s29, [#allocation8]
    $region9: #{tpu_custom_call.1} parent=1 // pred_fallthru
      _
    // Predicated region
    $region10: #{tpu_custom_call.1} parent=1 // pred_check
      _
    $region11: #{tpu_custom_call.1} parent=1 // pred_check_branch
      %33 = sbr.rel (0) target = $region13
    $region12: #{tpu_custom_call.1} parent=1 // pred_region
      %34 = dma.done [#allocation5], 64
    $region13: #{tpu_custom_call.1} parent=1 // pred_fallthru
      _
    // Predicated region
    $region14: #{tpu_custom_call.1} parent=1 // pred_check
      _
    $region15: #{tpu_custom_call.1} parent=1 // pred_check_branch
      %36 = sbr.rel (0) target = $region17
    $region16: #{tpu_custom_call.1} parent=1 // pred_region
      %37 = dma.done [#allocation8], 64
    $region17: #{tpu_custom_call.1} parent=1 // pred_fallthru
      _
    %v38 = vld [vmem:[#allocation4] sm:$0xf]
    %v39 = vld [vmem:[#allocation7] sm:$0xf]
    %v40 = vadd.f32 %v38, %v39
    %41 = vst [vmem:[#allocation9] sm:$0xf] %v40
    // Predicated region
    $region18: #{tpu_custom_call.1} parent=1 // pred_check
      _
    $region19: #{tpu_custom_call.1} parent=1 // pred_check_branch
      %43 = sbr.rel (0) target = $region21
    $region20: #{tpu_custom_call.1} parent=1 // pred_region
      %s45 = ssub.s32 64, 64
      %46 = vsyncadd [#allocation6], %s45
      %s48 = sshll.u32 [#allocation9], 4
      %s49 = int_to_ptr.vmem [resolvable:$true] %s48
      %51 = dma.vmem_to_hbm [thread:$0]  %s49, 64, %s3, [#allocation6]
    $region21: #{tpu_custom_call.1} parent=1 // pred_fallthru
      _
    // Predicated region
    $region22: #{tpu_custom_call.1} parent=1 // pred_check
      _
    $region23: #{tpu_custom_call.1} parent=1 // pred_check_branch
      %53 = sbr.rel (0) target = $region25
    $region24: #{tpu_custom_call.1} parent=1 // pred_region
      %54 = dma.done [#allocation6], 64
    $region25: #{tpu_custom_call.1} parent=1 // pred_fallthru
      _
    %55 = vsyncpa [#allocation5], 1
    %56 = vsyncpa [#allocation8], 1
    %57 = vsyncpa [#allocation6], 1

</llo_original>
